<compile_context>
chip_gen: v6e
topology: v6e:2x2x1
jax: 0.10.0
libtpu: 0.0.40
codegen_flags: <defaults>
</compile_context>

<pallas_src>
import math

import jax
import jax.numpy as jnp
from jax.experimental import pallas as pl
from jax.experimental.pallas import tpu as pltpu

LN_EPS = 1e-5  # nn.LayerNorm default


def _merge_reduce_norm_kernel(xe_ref, xo_ref, wa_ref, wb_ref, gamma_ref, beta_ref, o_ref):
    # xe_ref/xo_ref: (tq, Wo, 2C)  even-h / odd-h paired-pixel rows for tq output spatial rows
    # wa_ref/wb_ref: (2C, 2Co)     weight slabs (bf16), resident across the grid
    # gamma/beta:    (1, 2Co)      LayerNorm affine (f32)
    # o_ref:         (tq*Wo, 2Co)
    tq, wo, c2 = xe_ref.shape
    tn = tq * wo
    cd = wa_ref.dtype

    xe = xe_ref[...].reshape(tn, c2).astype(cd)
    xo = xo_ref[...].reshape(tn, c2).astype(cd)

    # Linear(4C -> 2C, no bias): two whole-tile bf16 MXU matmuls, f32 accumulation.
    y = jnp.dot(xe, wa_ref[...], preferred_element_type=jnp.float32)
    y = y + jnp.dot(xo, wb_ref[...], preferred_element_type=jnp.float32)

    # LayerNorm (biased variance), fused affine, one reduction pass over the whole tile.
    gamma = gamma_ref[...].astype(jnp.float32)
    beta = beta_ref[...].astype(jnp.float32)
    mean = jnp.mean(y, axis=-1, keepdims=True)
    var = jnp.maximum(jnp.mean(y * y, axis=-1, keepdims=True) - mean * mean, 0.0)
    scale = jax.lax.rsqrt(var + LN_EPS) * gamma
    shift = beta - mean * scale
    o_ref[...] = (y * scale + shift).astype(o_ref.dtype)


def prepare_patch_merging_params(reduction_weight, ln_gamma, ln_beta,
                                 compute_dtype=jnp.bfloat16):
    """One-time parameter prep (hoist out of the per-forward path).

    reduction_weight: (2C, 4C) torch Linear convention; merged channel order [x0,x1,x2,x3].
    Returns (wa, wb, gamma, beta) with wa/wb the even-h / odd-h (2C, 2C) slabs.
    """
    co, four_c = reduction_weight.shape
    C = four_c // 4
    wT = reduction_weight.T.astype(compute_dtype)                    # (4C, 2C)
    wa = jnp.concatenate([wT[0 * C:1 * C], wT[2 * C:3 * C]], axis=0)  # even h: [x0 | x2]
    wb = jnp.concatenate([wT[1 * C:2 * C], wT[3 * C:4 * C]], axis=0)  # odd  h: [x1 | x3]
    gamma = ln_gamma.reshape(1, co).astype(jnp.float32)
    beta = ln_beta.reshape(1, co).astype(jnp.float32)
    return wa, wb, gamma, beta


def _vmem_budget_bytes():
    cap = None
    try:
        cap = getattr(pltpu.get_tpu_info(), "vmem_capacity_bytes", None)
    except Exception:
        cap = None
    if not cap:
        cap = 64 * 1024 * 1024  # conservative: v7x per-TensorCore VMEM
    limit = min(max(int(cap * 0.85), 32 * 1024 * 1024), 100 * 1024 * 1024)
    budget = int(limit * 0.75)  # headroom for compiler scratch / semaphores
    return budget, limit


def patch_merging_forward(x, reduction_weight=None, ln_gamma=None, ln_beta=None, *,
                          params=None, row_tile=4096, compute_dtype=jnp.bfloat16,
                          out_dtype=None):
    """x: (B, H, W, C) channels-last. Returns (B, H//2, W//2, 2C) (ceil for odd H/W)."""
    B, H, W, C = x.shape
    ph, pw = H % 2, W % 2
    if ph or pw:
        # TODO(synk): odd-H/W takes one jnp.pad HBM copy in the wrapper.
        x = jnp.pad(x, ((0, 0), (0, ph), (0, pw), (0, 0)))
        H, W = H + ph, W + pw
    Ho, Wo = H // 2, W // 2
    Q = B * Ho              # output spatial rows
    N = Q * Wo              # output tokens
    c2 = 2 * C              # paired-input width
    co = 2 * C              # output / LayerNorm width
    out_dtype = x.dtype if out_dtype is None else out_dtype

    if params is None:
        params = prepare_patch_merging_params(reduction_weight, ln_gamma, ln_beta,
                                              compute_dtype=compute_dtype)
    wa, wb, gamma, beta = params

    # Free, contiguous view: xg[q, a, j, :] = [x[b, 2i+a, 2j, :], x[b, 2i+a, 2j+1, :]].
    xg = x.reshape(Q, 2, Wo, c2)

    # ---- tile selection (VMEM-budget aware, includes resident weight slabs) -------------
    budget, vmem_limit = _vmem_budget_bytes()
    in_item = jnp.dtype(x.dtype).itemsize
    out_item = jnp.dtype(out_dtype).itemsize
    w_item = jnp.dtype(wa.dtype).itemsize
    m = 8 // math.gcd(Wo, 8)                         # tq granularity keeping tq*Wo % 8 == 0
    fixed = 2 * 2 * (c2 * co * w_item) + 2 * 2 * (co * 4)          # wa+wb, gamma+beta (x2 bufs)
    per_token = 2 * (2 * c2 * in_item) + 2 * (co * out_item)       # 2 parity inputs + output (x2 bufs)
    tq_budget = max(m, (budget - fixed) // per_token // max(Wo, 1))
    tq = max(1, min(max(1, row_tile // max(Wo, 1)), tq_budget))
    if Q >= 4 * m:
        tq = min(tq, max(m, (Q // 4 // m) * m))      # keep >= 4 grid steps (dual-TC pipelining)
    tq = max(m, (tq // m) * m)
    if tq >= Q:
        tq = Q                                       # single block: tn == N, layout-legal
    tn = tq * Wo
    grid = pl.cdiv(Q, tq)                            # partial last block: masked writeback

    out_flat = pl.pallas_call(
        _merge_reduce_norm_kernel,
        out_shape=jax.ShapeDtypeStruct((N, co), out_dtype),
        grid_spec=pltpu.PrefetchScalarGridSpec(
            num_scalar_prefetch=0,
            grid=(grid,),
            in_specs=[
                pl.BlockSpec((tq, None, Wo, c2), lambda i: (i, 0, 0, 0)),  # even-h rows
                pl.BlockSpec((tq, None, Wo, c2), lambda i: (i, 1, 0, 0)),  # odd-h rows
                pl.BlockSpec((c2, co), lambda i: (0, 0)),                  # wa (resident)
                pl.BlockSpec((c2, co), lambda i: (0, 0)),                  # wb (resident)
                pl.BlockSpec((1, co), lambda i: (0, 0)),                   # gamma
                pl.BlockSpec((1, co), lambda i: (0, 0)),                   # beta
            ],
            out_specs=pl.BlockSpec((tn, co), lambda i: (i, 0)),
        ),
        compiler_params=pltpu.CompilerParams(
            dimension_semantics=("parallel",),
            vmem_limit_bytes=vmem_limit,
        ),
    )(xg, xg, wa, wb, gamma, beta)

    return out_flat.reshape(B, Ho, Wo, co)


def _reference_forward(x, reduction_weight, ln_gamma, ln_beta, compute_dtype=jnp.bfloat16):
    """Independent plain-JAX reference using the original concat formulation."""
    B, H, W, C = x.shape
    xp = jnp.pad(x, ((0, 0), (0, H % 2), (0, W % 2), (0, 0)))
    x0 = xp[:, 0::2, 0::2, :]
    x1 = xp[:, 1::2, 0::2, :]
    x2 = xp[:, 0::2, 1::2, :]
    x3 = xp[:, 1::2, 1::2, :]
    merged = jnp.concatenate([x0, x1, x2, x3], axis=-1)          # (B, Ho, Wo, 4C)
    # Quantize matmul operands the same way the kernel does (bf16 MXU inputs, f32 accumulate).
    mq = merged.astype(compute_dtype).astype(jnp.float32)
    wq = reduction_weight.T.astype(compute_dtype).astype(jnp.float32)
    y = jnp.einsum("bhwc,cd->bhwd", mq, wq,
                   precision=jax.lax.Precision.HIGHEST,
                   preferred_element_type=jnp.float32)
    mean = jnp.mean(y, axis=-1, keepdims=True)
    var = jnp.mean((y - mean) ** 2, axis=-1, keepdims=True)
    return (y - mean) * jax.lax.rsqrt(var + LN_EPS) * ln_gamma + ln_beta


if __name__ == "__main__":
    key = jax.random.PRNGKey(0)
    k_x, k_w, k_g, k_b = jax.random.split(key, 4)

    # Small shapes consistent with the module: dim=4, x is (B, H, W, dim).
    B, H, W, dim = 2, 16, 16, 4
    x = jax.random.normal(k_x, (B, H, W, dim), dtype=jnp.float32)

    # nn.Linear(4*dim, 2*dim, bias=False) -> weight shape (2*dim, 4*dim).
    bound = 1.0 / jnp.sqrt(4.0 * dim)
    reduction_weight = jax.random.uniform(
        k_w, (2 * dim, 4 * dim), minval=-bound, maxval=bound, dtype=jnp.float32)
    ln_gamma = jnp.ones((2 * dim,), jnp.float32) + 0.01 * jax.random.normal(k_g, (2 * dim,))
    ln_beta = jnp.zeros((2 * dim,), jnp.float32) + 0.01 * jax.random.normal(k_b, (2 * dim,))

    # Weight prep hoisted out of the per-call path.
    params = prepare_patch_merging_params(reduction_weight, ln_gamma, ln_beta)

    out = patch_merging_forward(x, params=params)
    out = jax.block_until_ready(out)

    ref = _reference_forward(x, reduction_weight, ln_gamma, ln_beta)
    assert out.shape == (B, H // 2, W // 2, 2 * dim), out.shape
    max_err = float(jnp.max(jnp.abs(out - ref)))
    assert jnp.allclose(out, ref, atol=2e-3, rtol=2e-3), f"mismatch vs reference, max err {max_err}"

    print("KERNEL_OK")
</pallas_src>

<mosaic_0001>
module attributes {stable_mosaic.version = 11 : i64} {
  func.func @_merge_reduce_norm_kernel(%arg0: i32, %arg1: memref<4x1x8x8xf32, #tpu.memory_space<vmem>>, %arg2: memref<4x1x8x8xf32, #tpu.memory_space<vmem>>, %arg3: memref<8x8xbf16, #tpu.memory_space<vmem>>, %arg4: memref<8x8xbf16, #tpu.memory_space<vmem>>, %arg5: memref<1x8xf32, #tpu.memory_space<vmem>>, %arg6: memref<1x8xf32, #tpu.memory_space<vmem>>, %arg7: memref<32x8xf32, #tpu.memory_space<vmem>>) attributes {dimension_semantics = [#tpu.dimension_semantics<parallel>], iteration_bounds = array<i64: 4>, scalar_prefetch = 0 : i64, scratch_operands = 0 : i64, tpu.core_type = #tpu.core_type<tc>, window_params = [{transform_indices = @transform_0, window_bounds = array<i64: 4, 1, 8, 8>}, {transform_indices = @transform_1, window_bounds = array<i64: 4, 1, 8, 8>}, {pipeline_mode = #tpu.pipeline_mode<synchronous>, transform_indices = @transform_2, window_bounds = array<i64: 8, 8>}, {pipeline_mode = #tpu.pipeline_mode<synchronous>, transform_indices = @transform_3, window_bounds = array<i64: 8, 8>}, {pipeline_mode = #tpu.pipeline_mode<synchronous>, transform_indices = @transform_4, window_bounds = array<i64: 1, 8>}, {pipeline_mode = #tpu.pipeline_mode<synchronous>, transform_indices = @transform_5, window_bounds = array<i64: 1, 8>}, {transform_indices = @transform_6, window_bounds = array<i64: 32, 8>}]} {
    %c0 = arith.constant 0 : index
    %c0_0 = arith.constant 0 : index
    %c0_1 = arith.constant 0 : index
    %c0_2 = arith.constant 0 : index
    %0 = vector.load %arg1[%c0, %c0_0, %c0_1, %c0_2] : memref<4x1x8x8xf32, #tpu.memory_space<vmem>>, vector<4x1x8x8xf32>
    %1 = vector.shape_cast %0 : vector<4x1x8x8xf32> to vector<4x8x8xf32>
    %2 = vector.shape_cast %1 : vector<4x8x8xf32> to vector<32x8xf32>
    %3 = arith.truncf %2 : vector<32x8xf32> to vector<32x8xbf16>
    %c0_3 = arith.constant 0 : index
    %c0_4 = arith.constant 0 : index
    %c0_5 = arith.constant 0 : index
    %c0_6 = arith.constant 0 : index
    %4 = vector.load %arg2[%c0_3, %c0_4, %c0_5, %c0_6] : memref<4x1x8x8xf32, #tpu.memory_space<vmem>>, vector<4x1x8x8xf32>
    %5 = vector.shape_cast %4 : vector<4x1x8x8xf32> to vector<4x8x8xf32>
    %6 = vector.shape_cast %5 : vector<4x8x8xf32> to vector<32x8xf32>
    %7 = arith.truncf %6 : vector<32x8xf32> to vector<32x8xbf16>
    %c0_7 = arith.constant 0 : index
    %c0_8 = arith.constant 0 : index
    %8 = vector.load %arg3[%c0_7, %c0_8] : memref<8x8xbf16, #tpu.memory_space<vmem>>, vector<8x8xbf16>
    %cst = arith.constant dense<0.000000e+00> : vector<32x8xf32>
    %9 = tpu.matmul %3, %8, %cst {dimension_numbers = #tpu.dot_dimension_numbers<[1], [0], [0], [1], [0, 0, 1, 1], [], []>} : vector<32x8xbf16>, vector<8x8xbf16>, vector<32x8xf32> -> vector<32x8xf32>
    %c0_9 = arith.constant 0 : index
    %c0_10 = arith.constant 0 : index
    %10 = vector.load %arg4[%c0_9, %c0_10] : memref<8x8xbf16, #tpu.memory_space<vmem>>, vector<8x8xbf16>
    %cst_11 = arith.constant dense<0.000000e+00> : vector<32x8xf32>
    %11 = tpu.matmul %7, %10, %cst_11 {dimension_numbers = #tpu.dot_dimension_numbers<[1], [0], [0], [1], [0, 0, 1, 1], [], []>} : vector<32x8xbf16>, vector<8x8xbf16>, vector<32x8xf32> -> vector<32x8xf32>
    %12 = arith.addf %9, %11 : vector<32x8xf32>
    %c0_12 = arith.constant 0 : index
    %c0_13 = arith.constant 0 : index
    %13 = vector.load %arg5[%c0_12, %c0_13] : memref<1x8xf32, #tpu.memory_space<vmem>>, vector<1x8xf32>
    %c0_14 = arith.constant 0 : index
    %c0_15 = arith.constant 0 : index
    %14 = vector.load %arg6[%c0_14, %c0_15] : memref<1x8xf32, #tpu.memory_space<vmem>>, vector<1x8xf32>
    %cst_16 = arith.constant dense<0.000000e+00> : vector<32xf32>
    %15 = vector.multi_reduction <add>, %12, %cst_16 [1] : vector<32x8xf32> to vector<32xf32>
    %16 = vector.shape_cast %15 : vector<32xf32> to vector<32x1xf32>
    %cst_17 = arith.constant 8.000000e+00 : f32
    %17 = vector.broadcast %cst_17 : f32 to vector<32x1xf32>
    %18 = arith.divf %16, %17 : vector<32x1xf32>
    %19 = arith.mulf %12, %12 : vector<32x8xf32>
    %cst_18 = arith.constant dense<0.000000e+00> : vector<32xf32>
    %20 = vector.multi_reduction <add>, %19, %cst_18 [1] : vector<32x8xf32> to vector<32xf32>
    %21 = vector.shape_cast %20 : vector<32xf32> to vector<32x1xf32>
    %cst_19 = arith.constant 8.000000e+00 : f32
    %22 = vector.broadcast %cst_19 : f32 to vector<32x1xf32>
    %23 = arith.divf %21, %22 : vector<32x1xf32>
    %24 = arith.mulf %18, %18 : vector<32x1xf32>
    %25 = arith.subf %23, %24 : vector<32x1xf32>
    %cst_20 = arith.constant 0.000000e+00 : f32
    %26 = vector.broadcast %cst_20 : f32 to vector<32x1xf32>
    %27 = arith.maximumf %25, %26 : vector<32x1xf32>
    %cst_21 = arith.constant 9.99999974E-6 : f32
    %28 = vector.broadcast %cst_21 : f32 to vector<32x1xf32>
    %29 = arith.addf %27, %28 : vector<32x1xf32>
    %30 = math.rsqrt %29 : vector<32x1xf32>
    %31 = vector.broadcast %30 : vector<32x1xf32> to vector<32x8xf32>
    %32 = vector.broadcast %13 : vector<1x8xf32> to vector<32x8xf32>
    %33 = arith.mulf %31, %32 : vector<32x8xf32>
    %34 = vector.broadcast %18 : vector<32x1xf32> to vector<32x8xf32>
    %35 = arith.mulf %34, %33 : vector<32x8xf32>
    %36 = vector.broadcast %14 : vector<1x8xf32> to vector<32x8xf32>
    %37 = arith.subf %36, %35 : vector<32x8xf32>
    %38 = arith.mulf %12, %33 : vector<32x8xf32>
    %39 = arith.addf %38, %37 : vector<32x8xf32>
    %c0_22 = arith.constant 0 : index
    %c0_23 = arith.constant 0 : index
    %40 = vector.load %arg7[%c0_22, %c0_23] : memref<32x8xf32, #tpu.memory_space<vmem>>, vector<32x8xf32>
    tpu.vector_store %arg7[%c0_22, %c0_23], %39 {strides = array<i32>} : memref<32x8xf32, #tpu.memory_space<vmem>>, vector<32x8xf32>,
    return
  }
  func.func @transform_0(%arg0: i32) -> (i32, i32, i32, i32) {
    %c0_i32 = arith.constant 0 : i32
    %c0_i32_0 = arith.constant 0 : i32
    %c0_i32_1 = arith.constant 0 : i32
    %c0_i32_2 = arith.constant 0 : i32
    return %arg0, %c0_i32, %c0_i32_0, %c0_i32_1 : i32, i32, i32, i32
  }
  func.func @transform_1(%arg0: i32) -> (i32, i32, i32, i32) {
    %c1_i32 = arith.constant 1 : i32
    %c0_i32 = arith.constant 0 : i32
    %c0_i32_0 = arith.constant 0 : i32
    %c0_i32_1 = arith.constant 0 : i32
    return %arg0, %c1_i32, %c0_i32, %c0_i32_0 : i32, i32, i32, i32
  }
  func.func @transform_2(%arg0: i32) -> (i32, i32) {
    %c0_i32 = arith.constant 0 : i32
    %c0_i32_0 = arith.constant 0 : i32
    %c0_i32_1 = arith.constant 0 : i32
    return %c0_i32, %c0_i32_0 : i32, i32
  }
  func.func @transform_3(%arg0: i32) -> (i32, i32) {
    %c0_i32 = arith.constant 0 : i32
    %c0_i32_0 = arith.constant 0 : i32
    %c0_i32_1 = arith.constant 0 : i32
    return %c0_i32, %c0_i32_0 : i32, i32
  }
  func.func @transform_4(%arg0: i32) -> (i32, i32) {
    %c0_i32 = arith.constant 0 : i32
    %c0_i32_0 = arith.constant 0 : i32
    %c0_i32_1 = arith.constant 0 : i32
    return %c0_i32, %c0_i32_0 : i32, i32
  }
  func.func @transform_5(%arg0: i32) -> (i32, i32) {
    %c0_i32 = arith.constant 0 : i32
    %c0_i32_0 = arith.constant 0 : i32
    %c0_i32_1 = arith.constant 0 : i32
    return %c0_i32, %c0_i32_0 : i32, i32
  }
  func.func @transform_6(%arg0: i32) -> (i32, i32) {
    %c0_i32 = arith.constant 0 : i32
    %c0_i32_0 = arith.constant 0 : i32
    return %arg0, %c0_i32 : i32, i32
  }
}

</mosaic_0001>

<llo_original>
// kernel: tpu_custom_call.1
$region0: #{tpu_custom_call.1}
  #allocation0 [shape = 'u32[]', space=smem, size = 0x4, offset = 0x4, fixed_abs, tag = 'smem constant byte address 0x4 - core index']
  #allocation1 [shape = 'u32[144,128]{1,0:T(1,128)}', space=vmem, size = 0x12000, scoped, tag = 'internal scratch']
  %s0 = inlined_call_operand.vmem [shape: f32[16,2,8,8], index: 0, kind: input, shape index: {}]
  %s1 = inlined_call_operand.vmem [shape: f32[16,2,8,8], index: 1, kind: input, shape index: {}]
  %s2 = inlined_call_operand.vmem [shape: bf16[8,8], index: 2, kind: input, shape index: {}]
  %s3 = inlined_call_operand.vmem [shape: bf16[8,8], index: 3, kind: input, shape index: {}]
  %s4 = inlined_call_operand.vmem [shape: f32[1,8], index: 4, kind: input, shape index: {}]
  %s5 = inlined_call_operand.vmem [shape: f32[1,8], index: 5, kind: input, shape index: {}]
  %s6 = inlined_call_operand.vmem [shape: f32[128,8], index: 6, kind: output, shape index: {}]
  %s7 = sld [smem:[#allocation0]]
  $region133: #{tpu_custom_call.1} parent=0
    _
  %s9 = ssub.s32 1, %s7
  %s10 = scalar_select 0, %s9, %s7
  $region1: #{tpu_custom_call.1} parent=0
    #allocation2 [shape = 'u8[32768]{0}', space=vmem, size = 0x8000, scoped, tag = 'input window, operand 0']
    #allocation3 [shape = 'u8[32768]{0}', space=vmem, size = 0x8000, scoped, tag = 'input window, operand 1']
    loop: start=0, step=1, limit=6
    $region2: #{tpu_custom_call.1} parent=1 // loop_pre_header
      _
    $region3: #{tpu_custom_call.1} parent=1 // loop_header
      %s12 = sphi 0, %s16
      %p13 = scmp.ge.s32.totalorder %s12, 6
      %s22 = sphi 0, %s24
      %s25 = sphi 0, %s22
      %s26 = sphi 0, %s25
      %s42 = sphi 0, %s26
      %s48 = sphi 0, %s50
      %s51 = sphi 0, %s48
      %s52 = sphi 0, %s51
      %s68 = sphi 0, %s52
      %s72 = sphi 0, %s72
      %s74 = sphi 0, %s72
      %s75 = sphi 0, %s74
      %s89 = sphi 0, %s75
      %s93 = sphi 0, %s93
      %s95 = sphi 0, %s93
      %s96 = sphi 0, %s95
      %s110 = sphi 0, %s96
      %s114 = sphi 0, %s114
      %s116 = sphi 0, %s114
      %s117 = sphi 0, %s116
      %s131 = sphi 0, %s117
      %s135 = sphi 0, %s135
      %s137 = sphi 0, %s135
      %s138 = sphi 0, %s137
      %s152 = sphi 0, %s138
      %s158 = sphi 0, %s160
      %s161 = sphi 0, %s158
      %s162 = sphi 0, %s161
      %s178 = sphi 0, %s162
    $region4: #{tpu_custom_call.1} parent=1 // loop_header_branch
      %15 = sbr.rel (%p13) target = $region8
    $region5: #{tpu_custom_call.1} parent=1 // loop_body
      %s17 = ssub.s32 %s12, 1
      %s18 = ssub.s32 %s12, 2
      %s19 = sadd.s32 %s12, 1
      %s20 = ssub.s32 %s12, %s19
      %p21 = scmp.eq.s32.totalorder %s20, 0
      %s23 = sadd.s32 %s22, 1
      %s24 = scalar_select %p21, %s22, %s23
      %p27 = pneg %p21
      %p28 = scmp.eq.s32.totalorder %s12, 3
      %p29 = por %p27, %p28
      %p30 = scmp.ne.s32.totalorder %s22, %s25
      %p31 = scmp.eq.s32.totalorder %s12, 0
      %p32 = por %p30, %p31
      %p33 = scmp.ne.s32.totalorder %s22, %s25
      %p34 = scmp.eq.s32.totalorder %s17, 3
      %p35 = por %p33, %p34
      %p36 = scmp.ne.s32.totalorder %s25, %s26
      %p37 = scmp.eq.s32.totalorder %s17, 0
      %p38 = por %p36, %p37
      %p39 = scmp.ne.s32.totalorder %s25, %s26
      %p40 = scmp.eq.s32.totalorder %s18, 3
      %p41 = por %p39, %p40
      %p43 = scmp.ne.s32.totalorder %s26, %s42
      %p44 = scmp.eq.s32.totalorder %s18, 0
      %p45 = por %p43, %p44
      %s46 = ssub.s32 %s12, %s19
      %p47 = scmp.eq.s32.totalorder %s46, 0
      %s49 = sadd.s32 %s48, 1
      %s50 = scalar_select %p47, %s48, %s49
      %p53 = pneg %p47
      %p54 = scmp.eq.s32.totalorder %s12, 3
      %p55 = por %p53, %p54
      %p56 = scmp.ne.s32.totalorder %s48, %s51
      %p57 = scmp.eq.s32.totalorder %s12, 0
      %p58 = por %p56, %p57
      %p59 = scmp.ne.s32.totalorder %s48, %s51
      %p60 = scmp.eq.s32.totalorder %s17, 3
      %p61 = por %p59, %p60
      %p62 = scmp.ne.s32.totalorder %s51, %s52
      %p63 = scmp.eq.s32.totalorder %s17, 0
      %p64 = por %p62, %p63
      %p65 = scmp.ne.s32.totalorder %s51, %s52
      %p66 = scmp.eq.s32.totalorder %s18, 3
      %p67 = por %p65, %p66
      %p69 = scmp.ne.s32.totalorder %s52, %s68
      %p70 = scmp.eq.s32.totalorder %s18, 0
      %p71 = por %p69, %p70
      %s73 = sadd.s32 %s72, 1
      %p76 = scmp.eq.s32.totalorder %s12, 3
      %p77 = scmp.ne.s32.totalorder %s72, %s74
      %p78 = scmp.eq.s32.totalorder %s12, 0
      %p79 = por %p77, %p78
      %p80 = scmp.ne.s32.totalorder %s72, %s74
      %p81 = scmp.eq.s32.totalorder %s17, 3
      %p82 = por %p80, %p81
      %p83 = scmp.ne.s32.totalorder %s74, %s75
      %p84 = scmp.eq.s32.totalorder %s17, 0
      %p85 = por %p83, %p84
      %p86 = scmp.ne.s32.totalorder %s74, %s75
      %p87 = scmp.eq.s32.totalorder %s18, 3
      %p88 = por %p86, %p87
      %p90 = scmp.ne.s32.totalorder %s75, %s89
      %p91 = scmp.eq.s32.totalorder %s18, 0
      %p92 = por %p90, %p91
      %s94 = sadd.s32 %s93, 1
      %p97 = scmp.eq.s32.totalorder %s12, 3
      %p98 = scmp.ne.s32.totalorder %s93, %s95
      %p99 = scmp.eq.s32.totalorder %s12, 0
      %p100 = por %p98, %p99
      %p101 = scmp.ne.s32.totalorder %s93, %s95
      %p102 = scmp.eq.s32.totalorder %s17, 3
      %p103 = por %p101, %p102
      %p104 = scmp.ne.s32.totalorder %s95, %s96
      %p105 = scmp.eq.s32.totalorder %s17, 0
      %p106 = por %p104, %p105
      %p107 = scmp.ne.s32.totalorder %s95, %s96
      %p108 = scmp.eq.s32.totalorder %s18, 3
      %p109 = por %p107, %p108
      %p111 = scmp.ne.s32.totalorder %s96, %s110
      %p112 = scmp.eq.s32.totalorder %s18, 0
      %p113 = por %p111, %p112
      %s115 = sadd.s32 %s114, 1
      %p118 = scmp.eq.s32.totalorder %s12, 3
      %p119 = scmp.ne.s32.totalorder %s114, %s116
      %p120 = scmp.eq.s32.totalorder %s12, 0
      %p121 = por %p119, %p120
      %p122 = scmp.ne.s32.totalorder %s114, %s116
      %p123 = scmp.eq.s32.totalorder %s17, 3
      %p124 = por %p122, %p123
      %p125 = scmp.ne.s32.totalorder %s116, %s117
      %p126 = scmp.eq.s32.totalorder %s17, 0
      %p127 = por %p125, %p126
      %p128 = scmp.ne.s32.totalorder %s116, %s117
      %p129 = scmp.eq.s32.totalorder %s18, 3
      %p130 = por %p128, %p129
      %p132 = scmp.ne.s32.totalorder %s117, %s131
      %p133 = scmp.eq.s32.totalorder %s18, 0
      %p134 = por %p132, %p133
      %s136 = sadd.s32 %s135, 1
      %p139 = scmp.eq.s32.totalorder %s12, 3
      %p140 = scmp.ne.s32.totalorder %s135, %s137
      %p141 = scmp.eq.s32.totalorder %s12, 0
      %p142 = por %p140, %p141
      %p143 = scmp.ne.s32.totalorder %s135, %s137
      %p144 = scmp.eq.s32.totalorder %s17, 3
      %p145 = por %p143, %p144
      %p146 = scmp.ne.s32.totalorder %s137, %s138
      %p147 = scmp.eq.s32.totalorder %s17, 0
      %p148 = por %p146, %p147
      %p149 = scmp.ne.s32.totalorder %s137, %s138
      %p150 = scmp.eq.s32.totalorder %s18, 3
      %p151 = por %p149, %p150
      %p153 = scmp.ne.s32.totalorder %s138, %s152
      %p154 = scmp.eq.s32.totalorder %s18, 0
      %p155 = por %p153, %p154
      %s156 = ssub.s32 %s12, %s19
      %p157 = scmp.eq.s32.totalorder %s156, 0
      %s159 = sadd.s32 %s158, 1
      %s160 = scalar_select %p157, %s158, %s159
      %p163 = pneg %p157
      %p164 = scmp.eq.s32.totalorder %s12, 3
      %p165 = por %p163, %p164
      %p166 = scmp.ne.s32.totalorder %s158, %s161
      %p167 = scmp.eq.s32.totalorder %s12, 0
      %p168 = por %p166, %p167
      %p169 = scmp.ne.s32.totalorder %s158, %s161
      %p170 = scmp.eq.s32.totalorder %s17, 3
      %p171 = por %p169, %p170
      %p172 = scmp.ne.s32.totalorder %s161, %s162
      %p173 = scmp.eq.s32.totalorder %s17, 0
      %p174 = por %p172, %p173
      %p175 = scmp.ne.s32.totalorder %s161, %s162
      %p176 = scmp.eq.s32.totalorder %s18, 3
      %p177 = por %p175, %p176
      %p179 = scmp.ne.s32.totalorder %s162, %s178
      %p180 = scmp.eq.s32.totalorder %s18, 0
      %p181 = por %p179, %p180
      %p182 = scmp.le.s32.totalorder 1, %s12
      %p183 = scmp.lt.s32.totalorder %s12, 5
      %p184 = pnand %p182, %p183
      %p185 = pneg %p184
      // Predicated region
      $region9: #{tpu_custom_call.1} parent=5 // pred_check
        _
      $region10: #{tpu_custom_call.1} parent=5 // pred_check_branch
        %187 = sbr.rel (%p184) target = $region12
      $region11: #{tpu_custom_call.1} parent=5 // pred_region
        %s188 = ssub.s32 %s12, 1
        // Predicated region
        $region13: #{tpu_custom_call.1} parent=11 // pred_check
          %p189 = pneg %p85
        $region14: #{tpu_custom_call.1} parent=11 // pred_check_branch
          %191 = sbr.rel (%p189) target = $region16
        $region15: #{tpu_custom_call.1} parent=11 // pred_region
          _
        $region16: #{tpu_custom_call.1} parent=11 // pred_fallthru
          _
        // Predicated region
        $region17: #{tpu_custom_call.1} parent=11 // pred_check
          %p192 = pneg %p106
        $region18: #{tpu_custom_call.1} parent=11 // pred_check_branch
          %194 = sbr.rel (%p192) target = $region20
        $region19: #{tpu_custom_call.1} parent=11 // pred_region
          _
        $region20: #{tpu_custom_call.1} parent=11 // pred_fallthru
          _
        // Predicated region
        $region21: #{tpu_custom_call.1} parent=11 // pred_check
          %p195 = pneg %p127
        $region22: #{tpu_custom_call.1} parent=11 // pred_check_branch
          %197 = sbr.rel (%p195) target = $region24
        $region23: #{tpu_custom_call.1} parent=11 // pred_region
          _
        $region24: #{tpu_custom_call.1} parent=11 // pred_fallthru
          _
        // Predicated region
        $region25: #{tpu_custom_call.1} parent=11 // pred_check
          %p198 = pneg %p148
        $region26: #{tpu_custom_call.1} parent=11 // pred_check_branch
          %200 = sbr.rel (%p198) target = $region28
        $region27: #{tpu_custom_call.1} parent=11 // pred_region
          _
        $region28: #{tpu_custom_call.1} parent=11 // pred_fallthru
          _
      $region12: #{tpu_custom_call.1} parent=5 // pred_fallthru
        _
      %p201 = scmp.lt.s32.totalorder %s12, 4
      // Predicated region
      $region29: #{tpu_custom_call.1} parent=5 // pred_check
        %p202 = pneg %p201
      $region30: #{tpu_custom_call.1} parent=5 // pred_check_branch
        %204 = sbr.rel (%p202) target = $region32
      $region31: #{tpu_custom_call.1} parent=5 // pred_region
        // Predicated region
        $region33: #{tpu_custom_call.1} parent=31 // pred_check
          %p205 = pneg %p32
        $region34: #{tpu_custom_call.1} parent=31 // pred_check_branch
          %207 = sbr.rel (%p205) target = $region36
        $region35: #{tpu_custom_call.1} parent=31 // pred_region
          %s208 = sand.u32 %s22, 1
          %s209 = sand.u32 %s22, 1
          %s210 = smul.addr %s209, 32
          %s211 = scalar_lea.vmem [#allocation2], %s210
          %s212 = smul.u32 4, %s12
          %s213 = smul.addr %s212, 2
          %s214 = smul.addr %s213, 8
          %s215 = scalar_lea.vmem %s0, %s214
          // Predicated region
          $region37: #{tpu_custom_call.1} parent=35 // pred_check
            _
          $region38: #{tpu_custom_call.1} parent=35 // pred_check_branch
            %217 = sbr.rel (0) target = $region40
          $region39: #{tpu_custom_call.1} parent=35 // pred_region
            // Predicated region
            $region41: #{tpu_custom_call.1} parent=39 // pred_check
              _
            $region42: #{tpu_custom_call.1} parent=39 // pred_check_branch
              %219 = sbr.rel (0) target = $region44
            $region43: #{tpu_custom_call.1} parent=39 // pred_region
              // Predicated region
              $region56: #{tpu_custom_call.1} parent=43 // pred_check
                _
              $region57: #{tpu_custom_call.1} parent=43 // pred_check_branch
                %241 = sbr.rel (0) target = $region59
              $region58: #{tpu_custom_call.1} parent=43 // pred_region
                loop: start=0, step=1, limit=1
                $region60: #{tpu_custom_call.1} parent=58 // loop_pre_header
                  _
                $region61: #{tpu_custom_call.1} parent=58 // loop_header
                  %s243 = sphi 0, %s247
                  %p244 = scmp.ge.s32.totalorder %s243, 1
                  %s248 = sphi %s215, %s215
                  %s249 = sphi %s211, %s211
                $region62: #{tpu_custom_call.1} parent=58 // loop_header_branch
                  %246 = sbr.rel (%p244) target = $region66
                $region63: #{tpu_custom_call.1} parent=58 // loop_body
                  %v250 = vld [vmem:[%s248] sm:$0xff]
                  %251 = vst [vmem:[%s249] sm:$0xff] %v250
                  %v252 = vld [vmem:[%s248 + $0x10] sm:$0xff]
                  %253 = vst [vmem:[%s249 + $0x8] sm:$0xff] %v252
                  %v254 = vld [vmem:[%s248 + $0x20] sm:$0xff]
                  %255 = vst [vmem:[%s249 + $0x10] sm:$0xff] %v254
                  %v256 = vld [vmem:[%s248 + $0x30] sm:$0xff]
                  %257 = vst [vmem:[%s249 + $0x18] sm:$0xff] %v256
                $region64: #{tpu_custom_call.1} parent=58 // loop_footer
                  %s247 = sadd.s32 1, %s243
                $region65: #{tpu_custom_call.1} parent=58 // loop_footer_branch
                  %242 = sbr.rel target = $region61
                $region66: #{tpu_custom_call.1} parent=58 // loop_exit
                  _
              $region59: #{tpu_custom_call.1} parent=43 // pred_fallthru
                _
              // Predicated region
              $region67: #{tpu_custom_call.1} parent=43 // pred_check
                _
              $region68: #{tpu_custom_call.1} parent=43 // pred_check_branch
                %259 = sbr.rel target = $region70
              $region69: #{tpu_custom_call.1} parent=43 // pred_region
                _
              $region70: #{tpu_custom_call.1} parent=43 // pred_fallthru
                _
            $region44: #{tpu_custom_call.1} parent=39 // pred_fallthru
              _
            // Predicated region
            $region45: #{tpu_custom_call.1} parent=39 // pred_check
              _
            $region46: #{tpu_custom_call.1} parent=39 // pred_check_branch
              %221 = sbr.rel target = $region48
            $region47: #{tpu_custom_call.1} parent=39 // pred_region
              %s223 = ssub.s32 256, 1
              loop: start=0, step=1, limit=1
              $region49: #{tpu_custom_call.1} parent=47 // loop_pre_header
                _
              $region50: #{tpu_custom_call.1} parent=47 // loop_header
                %s225 = sphi 0, %s229
                %p226 = scmp.ge.s32.totalorder %s225, 1
                %s230 = sphi %s215, %s215
                %s231 = sphi %s211, %s211
              $region51: #{tpu_custom_call.1} parent=47 // loop_header_branch
                %228 = sbr.rel (%p226) target = $region55
              $region52: #{tpu_custom_call.1} parent=47 // loop_body
                %v232 = vld [vmem:[%s230] sm:%s223]
                %233 = vst [vmem:[%s231] sm:%s223] %v232
                %v234 = vld [vmem:[%s230 + $0x10] sm:%s223]
                %235 = vst [vmem:[%s231 + $0x8] sm:%s223] %v234
                %v236 = vld [vmem:[%s230 + $0x20] sm:%s223]
                %237 = vst [vmem:[%s231 + $0x10] sm:%s223] %v236
                %v238 = vld [vmem:[%s230 + $0x30] sm:%s223]
                %239 = vst [vmem:[%s231 + $0x18] sm:%s223] %v238
              $region53: #{tpu_custom_call.1} parent=47 // loop_footer
                %s229 = sadd.s32 1, %s225
              $region54: #{tpu_custom_call.1} parent=47 // loop_footer_branch
                %224 = sbr.rel target = $region50
              $region55: #{tpu_custom_call.1} parent=47 // loop_exit
                _
            $region48: #{tpu_custom_call.1} parent=39 // pred_fallthru
              _
          $region40: #{tpu_custom_call.1} parent=35 // pred_fallthru
            _
          %260 = vnop
        $region36: #{tpu_custom_call.1} parent=31 // pred_fallthru
          _
        // Predicated region
        $region71: #{tpu_custom_call.1} parent=31 // pred_check
          %p261 = pneg %p58
        $region72: #{tpu_custom_call.1} parent=31 // pred_check_branch
          %263 = sbr.rel (%p261) target = $region74
        $region73: #{tpu_custom_call.1} parent=31 // pred_region
          %s264 = sand.u32 %s48, 1
          %s265 = sand.u32 %s48, 1
          %s266 = smul.addr %s265, 32
          %s267 = scalar_lea.vmem [#allocation3], %s266
          %s268 = smul.u32 4, %s12
          %s269 = smul.addr %s268, 2
          %s270 = sadd.s32 1, %s269
          %s271 = smul.addr %s270, 8
          %s272 = scalar_lea.vmem %s1, %s271
          // Predicated region
          $region75: #{tpu_custom_call.1} parent=73 // pred_check
            _
          $region76: #{tpu_custom_call.1} parent=73 // pred_check_branch
            %274 = sbr.rel (0) target = $region78
          $region77: #{tpu_custom_call.1} parent=73 // pred_region
            // Predicated region
            $region79: #{tpu_custom_call.1} parent=77 // pred_check
              _
            $region80: #{tpu_custom_call.1} parent=77 // pred_check_branch
              %276 = sbr.rel (0) target = $region82
            $region81: #{tpu_custom_call.1} parent=77 // pred_region
              // Predicated region
              $region94: #{tpu_custom_call.1} parent=81 // pred_check
                _
              $region95: #{tpu_custom_call.1} parent=81 // pred_check_branch
                %298 = sbr.rel (0) target = $region97
              $region96: #{tpu_custom_call.1} parent=81 // pred_region
                loop: start=0, step=1, limit=1
                $region98: #{tpu_custom_call.1} parent=96 // loop_pre_header
                  _
                $region99: #{tpu_custom_call.1} parent=96 // loop_header
                  %s300 = sphi 0, %s304
                  %p301 = scmp.ge.s32.totalorder %s300, 1
                  %s305 = sphi %s272, %s272
                  %s306 = sphi %s267, %s267
                $region100: #{tpu_custom_call.1} parent=96 // loop_header_branch
                  %303 = sbr.rel (%p301) target = $region104
                $region101: #{tpu_custom_call.1} parent=96 // loop_body
                  %v307 = vld [vmem:[%s305] sm:$0xff]
                  %308 = vst [vmem:[%s306] sm:$0xff] %v307
                  %v309 = vld [vmem:[%s305 + $0x10] sm:$0xff]
                  %310 = vst [vmem:[%s306 + $0x8] sm:$0xff] %v309
                  %v311 = vld [vmem:[%s305 + $0x20] sm:$0xff]
                  %312 = vst [vmem:[%s306 + $0x10] sm:$0xff] %v311
                  %v313 = vld [vmem:[%s305 + $0x30] sm:$0xff]
                  %314 = vst [vmem:[%s306 + $0x18] sm:$0xff] %v313
                $region102: #{tpu_custom_call.1} parent=96 // loop_footer
                  %s304 = sadd.s32 1, %s300
                $region103: #{tpu_custom_call.1} parent=96 // loop_footer_branch
                  %299 = sbr.rel target = $region99
                $region104: #{tpu_custom_call.1} parent=96 // loop_exit
                  _
              $region97: #{tpu_custom_call.1} parent=81 // pred_fallthru
                _
              // Predicated region
              $region105: #{tpu_custom_call.1} parent=81 // pred_check
                _
              $region106: #{tpu_custom_call.1} parent=81 // pred_check_branch
                %316 = sbr.rel target = $region108
              $region107: #{tpu_custom_call.1} parent=81 // pred_region
                _
              $region108: #{tpu_custom_call.1} parent=81 // pred_fallthru
                _
            $region82: #{tpu_custom_call.1} parent=77 // pred_fallthru
              _
            // Predicated region
            $region83: #{tpu_custom_call.1} parent=77 // pred_check
              _
            $region84: #{tpu_custom_call.1} parent=77 // pred_check_branch
              %278 = sbr.rel target = $region86
            $region85: #{tpu_custom_call.1} parent=77 // pred_region
              %s280 = ssub.s32 256, 1
              loop: start=0, step=1, limit=1
              $region87: #{tpu_custom_call.1} parent=85 // loop_pre_header
                _
              $region88: #{tpu_custom_call.1} parent=85 // loop_header
                %s282 = sphi 0, %s286
                %p283 = scmp.ge.s32.totalorder %s282, 1
                %s287 = sphi %s272, %s272
                %s288 = sphi %s267, %s267
              $region89: #{tpu_custom_call.1} parent=85 // loop_header_branch
                %285 = sbr.rel (%p283) target = $region93
              $region90: #{tpu_custom_call.1} parent=85 // loop_body
                %v289 = vld [vmem:[%s287] sm:%s280]
                %290 = vst [vmem:[%s288] sm:%s280] %v289
                %v291 = vld [vmem:[%s287 + $0x10] sm:%s280]
                %292 = vst [vmem:[%s288 + $0x8] sm:%s280] %v291
                %v293 = vld [vmem:[%s287 + $0x20] sm:%s280]
                %294 = vst [vmem:[%s288 + $0x10] sm:%s280] %v293
                %v295 = vld [vmem:[%s287 + $0x30] sm:%s280]
                %296 = vst [vmem:[%s288 + $0x18] sm:%s280] %v295
              $region91: #{tpu_custom_call.1} parent=85 // loop_footer
                %s286 = sadd.s32 1, %s282
              $region92: #{tpu_custom_call.1} parent=85 // loop_footer_branch
                %281 = sbr.rel target = $region88
              $region93: #{tpu_custom_call.1} parent=85 // loop_exit
                _
            $region86: #{tpu_custom_call.1} parent=77 // pred_fallthru
              _
          $region78: #{tpu_custom_call.1} parent=73 // pred_fallthru
            _
          %317 = vnop
        $region74: #{tpu_custom_call.1} parent=31 // pred_fallthru
          _
      $region32: #{tpu_custom_call.1} parent=5 // pred_fallthru
        _
      %p318 = scmp.le.s32.totalorder 1, %s12
      %p319 = scmp.lt.s32.totalorder %s12, 5
      %p320 = pnand %p318, %p319
      %p321 = pneg %p320
      // Predicated region
      $region109: #{tpu_custom_call.1} parent=5 // pred_check
        _
      $region110: #{tpu_custom_call.1} parent=5 // pred_check_branch
        %323 = sbr.rel (%p320) target = $region112
      $region111: #{tpu_custom_call.1} parent=5 // pred_region
        %s324 = ssub.s32 %s12, 1
        %s325 = sand.u32 %s25, 1
        %s326 = sand.u32 %s25, 1
        %s327 = smul.addr %s326, 32
        %s328 = scalar_lea.vmem [#allocation2], %s327
        // Predicated region
        $region113: #{tpu_custom_call.1} parent=111 // pred_check
          %p329 = pneg %p38
        $region114: #{tpu_custom_call.1} parent=111 // pred_check_branch
          %331 = sbr.rel (%p329) target = $region116
        $region115: #{tpu_custom_call.1} parent=111 // pred_region
          _
        $region116: #{tpu_custom_call.1} parent=111 // pred_fallthru
          _
        %s332 = sand.u32 %s51, 1
        %s333 = sand.u32 %s51, 1
        %s334 = smul.addr %s333, 32
        %s335 = scalar_lea.vmem [#allocation3], %s334
        // Predicated region
        $region117: #{tpu_custom_call.1} parent=111 // pred_check
          %p336 = pneg %p64
        $region118: #{tpu_custom_call.1} parent=111 // pred_check_branch
          %338 = sbr.rel (%p336) target = $region120
        $region119: #{tpu_custom_call.1} parent=111 // pred_region
          _
        $region120: #{tpu_custom_call.1} parent=111 // pred_fallthru
          _
        %s339 = sand.u32 %s25, 1
        %s340 = sand.u32 %s25, 1
        %s341 = smul.addr %s340, 32
        %s342 = scalar_lea.vmem [#allocation2], %s341
        %p343 = pneg %p38
        %p344 = pneg %p35
        %s345 = sand.u32 %s51, 1
        %s346 = sand.u32 %s51, 1
        %s347 = smul.addr %s346, 32
        %s348 = scalar_lea.vmem [#allocation3], %s347
        %p349 = pneg %p64
        %p350 = pneg %p61
        %p351 = pneg %p85
        %p352 = pneg %p82
        %p353 = pneg %p106
        %p354 = pneg %p103
        %p355 = pneg %p127
        %p356 = pneg %p124
        %p357 = pneg %p148
        %p358 = pneg %p145
        %p359 = pneg %p174
        %p360 = pneg %p171
        %s361 = smul.u32 4, %s17
        %p362 = scmp.lt.s32.totalorder %s361, 15
        %s363 = scalar_select %p362, %s361, 15
        %s364 = smul.addr %s363, 8
        %s365 = scalar_lea.vmem %s6, %s364
        %s366 = smul.u32 4, %s17
        %s367 = smul.u32 4, %s17
        %s368 = smul.u32 4, %s17
        %p369 = scmp.lt.s32.totalorder %s368, 15
        %s370 = scalar_select %p369, %s368, 15
        %s371 = smul.addr %s370, 8
        %s372 = scalar_lea.vmem %s6, %s371
        %s373 = smul.u32 4, %s17
        %v375 = vld [vmem:[%s328] sm:$0xff]
        %v376 = vld [vmem:[%s328 + $0x8] sm:$0xff]
        %v377 = vld [vmem:[%s328 + $0x10] sm:$0xff]
        %v378 = vld [vmem:[%s328 + $0x18] sm:$0xff]
        %v379 = vpack.c.bf16 %v376, %v375
        %v380 = vpack.c.bf16 %v378, %v377
        %v381 = vld [vmem:[%s335] sm:$0xff]
        %v382 = vld [vmem:[%s335 + $0x8] sm:$0xff]
        %v383 = vld [vmem:[%s335 + $0x10] sm:$0xff]
        %v384 = vld [vmem:[%s335 + $0x18] sm:$0xff]
        %v385 = vpack.c.bf16 %v382, %v381
        %v386 = vpack.c.bf16 %v384, %v383
        %v387 = vld [vmem:[%s2] sm:$0xf]
        %v388 = vld [vmem:[%s3] sm:$0xf]
        %vm389 = vcmask 64512
        %v391 = vsel %vm389, %v385, 0
        %v394 = vsel %vm389, %v386, 0
        %vm396 = vcmask 1043456
        %v398 = vsel %vm396, %v388, 0
        %400 = vmatprep.subr.bf16.mxu0 0
        %401 = vmatpush1.bf16.msra.mxu0 0
        %402 = vmatprep.subr.bf16.mxu0 0
        %403 = vmatpush1.bf16.msra.mxu0 0
        %404 = vmatprep.subr.bf16.mxu0 0
        %405 = vmatpush1.bf16.msra.mxu0 0
        %406 = vmatprep.subr.bf16.mxu0 0
        %407 = vmatpush1.bf16.msra.mxu0 0
        %408 = vmatprep.subr.bf16.mxu0 0
        %409 = vmatpush1.bf16.msra.mxu0 0
        %410 = vmatprep.subr.bf16.mxu0 0
        %411 = vmatpush1.bf16.msra.mxu0 0
        %412 = vmatprep.subr.bf16.mxu0 0
        %413 = vmatpush1.bf16.msra.mxu0 0
        %414 = vmatprep.subr.bf16.mxu0 0
        %415 = vmatpush1.bf16.msra.mxu0 %v398
        %416 = vmatprep.subr.bf16.mxu0 0
        %417 = vmatpush2.bf16.msra.mxu0 0
        %418 = vmatprep.subr.bf16.mxu0 0
        %419 = vmatpush2.bf16.msra.mxu0 0
        %420 = vmatprep.subr.bf16.mxu0 0
        %421 = vmatpush2.bf16.msra.mxu0 0
        %422 = vmatprep.subr.bf16.mxu0 0
        %423 = vmatpush2.bf16.msra.mxu0 0
        %424 = vmatprep.subr.bf16.mxu0 0
        %425 = vmatpush2.bf16.msra.mxu0 0
        %426 = vmatprep.subr.bf16.mxu0 0
        %427 = vmatpush2.bf16.msra.mxu0 0
        %428 = vmatprep.subr.bf16.mxu0 0
        %429 = vmatpush2.bf16.msra.mxu0 0
        %430 = vmatprep.subr.bf16.mxu0 0
        %431 = vmatpush2.bf16.msra.mxu0 0
        %432 = vmatprep.mubr.bf16.mxu0 0
        %433 = vmatmul.mubr.bf16.gmra.mxu0 %v391
        %v434 = vpop.f32.mrf.mxu0
        %v435 = vadd.f32 0.0, %v434
        %v436 = vpop.f32.mrf.mxu0
        %v437 = vpop.f32.mrf.mxu0
        %v438 = vadd.f32 0.0, %v437
        %v439 = vpop.f32.mrf.mxu0
        %440 = vmatprep.mubr.bf16.mxu0 0
        %441 = vmatmul.mubr.bf16.gmra.mxu0 %v394
        %v442 = vpop.f32.mrf.mxu0
        %v443 = vadd.f32 0.0, %v442
        %v444 = vpop.f32.mrf.mxu0
        %v445 = vpop.f32.mrf.mxu0
        %v446 = vadd.f32 0.0, %v445
        %v447 = vpop.f32.mrf.mxu0
        %448 = vdwg.mxu0
        %v450 = vsel %vm389, %v379, 0
        %v453 = vsel %vm389, %v380, 0
        %v456 = vsel %vm396, %v387, 0
        %458 = vmatprep.subr.bf16.mxu0 0
        %459 = vmatpush1.bf16.msra.mxu0 0
        %460 = vmatprep.subr.bf16.mxu0 0
        %461 = vmatpush1.bf16.msra.mxu0 0
        %462 = vmatprep.subr.bf16.mxu0 0
        %463 = vmatpush1.bf16.msra.mxu0 0
        %464 = vmatprep.subr.bf16.mxu0 0
        %465 = vmatpush1.bf16.msra.mxu0 0
        %466 = vmatprep.subr.bf16.mxu0 0
        %467 = vmatpush1.bf16.msra.mxu0 0
        %468 = vmatprep.subr.bf16.mxu0 0
        %469 = vmatpush1.bf16.msra.mxu0 0
        %470 = vmatprep.subr.bf16.mxu0 0
        %471 = vmatpush1.bf16.msra.mxu0 0
        %472 = vmatprep.subr.bf16.mxu0 0
        %473 = vmatpush1.bf16.msra.mxu0 %v456
        %474 = vmatprep.subr.bf16.mxu0 0
        %475 = vmatpush2.bf16.msra.mxu0 0
        %476 = vmatprep.subr.bf16.mxu0 0
        %477 = vmatpush2.bf16.msra.mxu0 0
        %478 = vmatprep.subr.bf16.mxu0 0
        %479 = vmatpush2.bf16.msra.mxu0 0
        %480 = vmatprep.subr.bf16.mxu0 0
        %481 = vmatpush2.bf16.msra.mxu0 0
        %482 = vmatprep.subr.bf16.mxu0 0
        %483 = vmatpush2.bf16.msra.mxu0 0
        %484 = vmatprep.subr.bf16.mxu0 0
        %485 = vmatpush2.bf16.msra.mxu0 0
        %486 = vmatprep.subr.bf16.mxu0 0
        %487 = vmatpush2.bf16.msra.mxu0 0
        %488 = vmatprep.subr.bf16.mxu0 0
        %489 = vmatpush2.bf16.msra.mxu0 0
        %490 = vmatprep.mubr.bf16.mxu0 0
        %491 = vmatmul.mubr.bf16.gmra.mxu0 %v450
        %v492 = vpop.f32.mrf.mxu0
        %v493 = vadd.f32 %v435, %v492
        %v494 = vpop.f32.mrf.mxu0
        %v495 = vpop.f32.mrf.mxu0
        %v496 = vadd.f32 %v438, %v495
        %v497 = vpop.f32.mrf.mxu0
        %498 = vmatprep.mubr.bf16.mxu0 0
        %499 = vmatmul.mubr.bf16.gmra.mxu0 %v453
        %v500 = vpop.f32.mrf.mxu0
        %v501 = vadd.f32 %v443, %v500
        %v502 = vpop.f32.mrf.mxu0
        %v503 = vpop.f32.mrf.mxu0
        %v504 = vadd.f32 %v446, %v503
        %v505 = vpop.f32.mrf.mxu0
        %506 = vdwg.mxu0
        %v507 = vld [vmem:[%s4] sm:$0x1]
        %v508 = vld [vmem:[%s5] sm:$0x1]
        %v509 = vsel %vm389, %v493, 0.0
        %510 = vadd.xlane.f32.xlu0 %v509
        %v511 = vpop.xlane.xlu0 %510
        %v512 = vsel %vm389, %v496, 0.0
        %513 = vadd.xlane.f32.xlu0 %v512
        %v514 = vpop.xlane.xlu0 %513
        %v515 = vsel %vm389, %v501, 0.0
        %516 = vadd.xlane.f32.xlu0 %v515
        %v517 = vpop.xlane.xlu0 %516
        %v518 = vsel %vm389, %v504, 0.0
        %519 = vadd.xlane.f32.xlu0 %v518
        %v520 = vpop.xlane.xlu0 %519
        %v521 = vrcp.pop 8.0
        %v522 = vmul.f32 %v511, %v521
        %v523 = vmul.f32 %v514, %v521
        %v524 = vmul.f32 %v517, %v521
        %v525 = vmul.f32 %v520, %v521
        %v526 = vmul.f32 %v493, %v493
        %v527 = vmul.f32 %v496, %v496
        %v528 = vmul.f32 %v501, %v501
        %v529 = vmul.f32 %v504, %v504
        %v530 = vsel %vm389, %v526, 0.0
        %531 = vadd.xlane.f32.xlu0 %v530
        %v532 = vpop.xlane.xlu0 %531
        %v533 = vsel %vm389, %v527, 0.0
        %534 = vadd.xlane.f32.xlu0 %v533
        %v535 = vpop.xlane.xlu0 %534
        %v536 = vsel %vm389, %v528, 0.0
        %537 = vadd.xlane.f32.xlu0 %v536
        %v538 = vpop.xlane.xlu0 %537
        %v539 = vsel %vm389, %v529, 0.0
        %540 = vadd.xlane.f32.xlu0 %v539
        %v541 = vpop.xlane.xlu0 %540
        %v542 = vmul.f32 %v532, %v521
        %v543 = vmul.f32 %v535, %v521
        %v544 = vmul.f32 %v538, %v521
        %v545 = vmul.f32 %v541, %v521
        %v546 = vmul.f32 %v522, %v522
        %v547 = vmul.f32 %v523, %v523
        %v548 = vmul.f32 %v524, %v524
        %v549 = vmul.f32 %v525, %v525
        %v550 = vsub.f32 %v542, %v546
        %v551 = vsub.f32 %v543, %v547
        %v552 = vsub.f32 %v544, %v548
        %v553 = vsub.f32 %v545, %v549
        %v554 = vmax.f32 %v550, 0.0
        %v555 = vmax.f32 %v551, 0.0
        %v556 = vmax.f32 %v552, 0.0
        %v557 = vmax.f32 %v553, 0.0
        %v558 = vadd.f32 %v554, 1e-05
        %v559 = vadd.f32 %v555, 1e-05
        %v560 = vadd.f32 %v556, 1e-05
        %v561 = vadd.f32 %v557, 1e-05
        %v562 = vrsqrt.pop %v558
        %v563 = vrsqrt.pop %v559
        %v564 = vrsqrt.pop %v560
        %v565 = vrsqrt.pop %v561
        %v567 = vlaneseq
        %v568 = vshrl.u32 %v567, 7
        %v569 = vsub.s32 0, %v568
        %v570 = vrot.slane %v507, %v569
        %v572 = vmul.f32 %v562, %v570
        %v573 = vmul.f32 %v563, %v570
        %v574 = vmul.f32 %v564, %v570
        %v575 = vmul.f32 %v565, %v570
        %v576 = vmul.f32 %v522, %v572
        %v577 = vmul.f32 %v523, %v573
        %v578 = vmul.f32 %v524, %v574
        %v579 = vmul.f32 %v525, %v575
        %v581 = vlaneseq
        %v582 = vshrl.u32 %v581, 7
        %v583 = vsub.s32 0, %v582
        %v584 = vrot.slane %v508, %v583
        %v586 = vsub.f32 %v584, %v576
        %v587 = vsub.f32 %v584, %v577
        %v588 = vsub.f32 %v584, %v578
        %v589 = vsub.f32 %v584, %v579
        %v590 = vmul.f32 %v493, %v572
        %v591 = vmul.f32 %v496, %v573
        %v592 = vmul.f32 %v501, %v574
        %v593 = vmul.f32 %v504, %v575
        %v594 = vadd.f32 %v590, %v586
        %v595 = vadd.f32 %v591, %v587
        %v596 = vadd.f32 %v592, %v588
        %v597 = vadd.f32 %v593, %v589
        %598 = vst.msk [vmem:[%s372] sm:$0xff] %vm389, %v594
        %599 = vst.msk [vmem:[%s372 + $0x8] sm:$0xff] %vm389, %v595
        %600 = vst.msk [vmem:[%s372 + $0x10] sm:$0xff] %vm389, %v596
        %601 = vst.msk [vmem:[%s372 + $0x18] sm:$0xff] %vm389, %v597
        %s602 = smul.u32 4, %s17
        %p603 = scmp.lt.s32.totalorder %s602, 15
        %s604 = scalar_select %p603, %s602, 15
        %s605 = smul.addr %s604, 8
        %s606 = scalar_lea.vmem %s6, %s605
        // Predicated region
        $region121: #{tpu_custom_call.1} parent=111 // pred_check
          %p607 = pneg %p171
        $region122: #{tpu_custom_call.1} parent=111 // pred_check_branch
          %609 = sbr.rel (%p607) target = $region124
        $region123: #{tpu_custom_call.1} parent=111 // pred_region
          %s610 = smul.u32 4, %s17
        $region124: #{tpu_custom_call.1} parent=111 // pred_fallthru
          _
      $region112: #{tpu_custom_call.1} parent=5 // pred_fallthru
        _
      %p611 = scmp.le.s32.totalorder 2, %s12
      // Predicated region
      $region125: #{tpu_custom_call.1} parent=5 // pred_check
        %p612 = pneg %p611
      $region126: #{tpu_custom_call.1} parent=5 // pred_check_branch
        %614 = sbr.rel (%p612) target = $region128
      $region127: #{tpu_custom_call.1} parent=5 // pred_region
        %s615 = ssub.s32 %s12, 2
        // Predicated region
        $region129: #{tpu_custom_call.1} parent=127 // pred_check
          %p616 = pneg %p177
        $region130: #{tpu_custom_call.1} parent=127 // pred_check_branch
          %618 = sbr.rel (%p616) target = $region132
        $region131: #{tpu_custom_call.1} parent=127 // pred_region
          %s619 = smul.u32 4, %s18
          %p620 = scmp.lt.s32.totalorder %s619, 15
          %s621 = scalar_select %p620, %s619, 15
          %s622 = smul.addr %s621, 8
          %s623 = scalar_lea.vmem %s6, %s622
        $region132: #{tpu_custom_call.1} parent=127 // pred_fallthru
          _
      $region128: #{tpu_custom_call.1} parent=5 // pred_fallthru
        _
    $region6: #{tpu_custom_call.1} parent=1 // loop_footer
      %s16 = sadd.s32 1, %s12
    $region7: #{tpu_custom_call.1} parent=1 // loop_footer_branch
      %11 = sbr.rel target = $region3
    $region8: #{tpu_custom_call.1} parent=1 // loop_exit
      _

</llo_original>
